<compile_context>
chip_gen: v7x
topology: tpu7x:2x2x1
jax: 0.10.0
libtpu: 0.0.40
codegen_flags: <defaults>
</compile_context>

<pallas_src>
import math

import jax
import jax.numpy as jnp
from jax.experimental import pallas as pl
from jax.experimental.pallas import tpu as pltpu


def _actor_kernel(x_ref,
                  w1_ref, bn1_ref,
                  w2_ref, bn2_ref,
                  w3_ref, b3_ref,
                  o_ref):
    eps = 1e-5
    x = x_ref[0]                                     # (B, S) f32 for this timestep
    inv_b = 1.0 / x.shape[0]                         # compile-time constant

    def bn_relu(h, bn_ref):
        # Single-pass batch statistics: var = E[h^2] - E[h]^2 (biased, training BN),
        # clamped to >= 0 to guard f32 cancellation before rsqrt.
        mu = jnp.sum(h, axis=0, keepdims=True) * inv_b            # (1, N)
        ex2 = jnp.sum(h * h, axis=0, keepdims=True) * inv_b       # (1, N)
        var = jnp.maximum(ex2 - mu * mu, 0.0)
        inv = jax.lax.rsqrt(var + eps)
        g = bn_ref[0:1, :]                                        # static slice: free
        be = bn_ref[1:2, :]
        scale = g * inv                                           # (1, N)
        shift = be - mu * scale                                   # (1, N)
        return jnp.maximum(h * scale + shift, 0.0)

    # ----- fc1 + bn1 + relu (fc1 bias cancelled by training-mode BN; omitted) -----
    h = jnp.dot(x.astype(jnp.bfloat16), w1_ref[...],
                preferred_element_type=jnp.float32)
    h = bn_relu(h, bn1_ref)

    # ----- fc2 + bn2 + relu (fc2 bias cancelled by training-mode BN; omitted) -----
    h = jnp.dot(h.astype(jnp.bfloat16), w2_ref[...],
                preferred_element_type=jnp.float32)
    h = bn_relu(h, bn2_ref)

    # ----- fc3 (returned directly, per the module's forward) -----
    o_ref[0] = (jnp.dot(h.astype(jnp.bfloat16), w3_ref[...],
                        preferred_element_type=jnp.float32)
                + b3_ref[...]).astype(o_ref.dtype)


def portfolio_actor_forward(states, params):
    """states: (T, B, state_size) f32.

    Returns (T, B, n_pad) f32 where n_pad = fc3 width padded to 128 lanes;
    columns >= fc3_units are exactly zero.  Weights stay resident in VMEM
    across the whole T grid (constant index_maps).
    """
    T, B, S = states.shape
    F1 = params["w1"].shape[1]
    F2 = params["w2"].shape[1]
    n_pad = params["w3"].shape[1]          # padded at init to a multiple of 128

    const2 = lambda t: (0, 0)              # weight / BN blocks: resident across T

    return pl.pallas_call(
        _actor_kernel,
        grid=(T,),
        in_specs=[
            pl.BlockSpec((1, B, S), lambda t: (t, 0, 0)),     # per-step state tile
            pl.BlockSpec((S, F1), const2),                    # w1 (bf16)
            pl.BlockSpec((2, F1), const2),                    # bn1 gamma/beta (f32)
            pl.BlockSpec((F1, F2), const2),                   # w2 (bf16)
            pl.BlockSpec((2, F2), const2),                    # bn2 gamma/beta (f32)
            pl.BlockSpec((F2, n_pad), const2),                # w3 (bf16, lane-padded)
            pl.BlockSpec((1, n_pad), const2),                 # b3 (f32, lane-padded)
        ],
        out_specs=pl.BlockSpec((1, B, n_pad), lambda t: (t, 0, 0)),
        out_shape=jax.ShapeDtypeStruct((T, B, n_pad), jnp.float32),
        compiler_params=pltpu.CompilerParams(
            dimension_semantics=("parallel",)),               # v7x: shard T over 2 TCs
    )(states,
      params["w1"], params["bn1"],
      params["w2"], params["bn2"],
      params["w3"], params["b3"])


def portfolio_actor_step(state, params):
    """Convenience single-step wrapper: state (B, S) -> (B, n_pad)."""
    return portfolio_actor_forward(state[None], params)[0]


def init_params(key, state_size, fc1_units=256, fc2_units=128, fc3_units=64):
    """Deterministic init mirroring PortfolioActor.reset_parameters().

    Weights are stored transposed vs PyTorch, i.e. (in, out), in bfloat16 so
    the kernel hot path is a plain bf16 `x @ W` on the MXU with f32
    accumulation.  fc1/fc2 biases are not stored: they are exactly cancelled
    by training-mode BatchNorm.  fc3 width is zero-padded to a multiple of
    128 lanes for a lane-dense final store; `fc3_units` is kept OUT of the
    returned pytree (static value at the call site).
    """
    k1, k2, k3 = jax.random.split(key, 3)

    def uniform_fan_in(k, fan_in, fan_out):
        lim = 1.0 / math.sqrt(fan_in)
        w = jax.random.uniform(k, (fan_in, fan_out), jnp.float32, -lim, lim)
        return w.astype(jnp.bfloat16)

    n_pad = ((fc3_units + 127) // 128) * 128
    w3 = uniform_fan_in(k3, fc2_units, fc3_units)
    w3 = jnp.pad(w3, ((0, 0), (0, n_pad - fc3_units)))
    b3 = jnp.zeros((1, n_pad), jnp.float32)

    def bn_pack(n):
        # row 0 = gamma (ones), row 1 = beta (zeros); kept in f32.
        return jnp.concatenate([jnp.ones((1, n), jnp.float32),
                                jnp.zeros((1, n), jnp.float32)], axis=0)

    return {
        "w1": uniform_fan_in(k1, state_size, fc1_units),
        "bn1": bn_pack(fc1_units),
        "w2": uniform_fan_in(k2, fc1_units, fc2_units),
        "bn2": bn_pack(fc2_units),
        "w3": w3,
        "b3": b3,
    }


if __name__ == "__main__":
    key = jax.random.PRNGKey(0)
    k_params, k_state = jax.random.split(key)

    T = 4                # timesteps stacked per call (grid axis; weights resident)
    batch = 8            # BN uses batch statistics: this IS the per-step stats batch
    state_size = 32      # e.g. 4 assets x 8 features
    fc1_units, fc2_units, fc3_units = 256, 128, 64
    n_pad = ((fc3_units + 127) // 128) * 128

    params = init_params(k_params, state_size, fc1_units, fc2_units, fc3_units)
    states = jax.random.normal(k_state, (T, batch, state_size), jnp.float32)

    out = portfolio_actor_forward(states, params)
    out = jax.block_until_ready(out)

    # pure-JAX reference (two-pass BN variance as in PyTorch; same bf16 matmul path)
    def ref(xs, p, n_out):
        eps = 1e-5

        def mm(a, b):
            return jnp.dot(a.astype(jnp.bfloat16), b,
                           preferred_element_type=jnp.float32)

        def bn_relu(h, bn):
            mu = h.mean(0, keepdims=True)
            var = ((h - mu) ** 2).mean(0, keepdims=True)
            return jnp.maximum((h - mu) / jnp.sqrt(var + eps) * bn[0:1] + bn[1:2],
                               0.0)

        def one_step(x):
            h = bn_relu(mm(x, p["w1"]), p["bn1"])
            h = bn_relu(mm(h, p["w2"]), p["bn2"])
            return mm(h, p["w3"]) + p["b3"]

        return jax.vmap(one_step)(xs)[:, :, :n_out]

    expected = ref(states, params, fc3_units)
    assert out.shape == (T, batch, n_pad)
    assert bool(jnp.all(out[:, :, fc3_units:] == 0.0))           # padded lanes are zero
    assert jnp.allclose(out[:, :, :fc3_units], expected, atol=2e-3, rtol=2e-3)
    print("KERNEL_OK")
</pallas_src>

<mosaic_0001>
module attributes {stable_mosaic.version = 11 : i64} {
  func.func @_actor_kernel(%arg0: i32, %arg1: memref<1x8x32xf32, #tpu.memory_space<vmem>>, %arg2: memref<32x256xbf16, #tpu.memory_space<vmem>>, %arg3: memref<2x256xf32, #tpu.memory_space<vmem>>, %arg4: memref<256x128xbf16, #tpu.memory_space<vmem>>, %arg5: memref<2x128xf32, #tpu.memory_space<vmem>>, %arg6: memref<128x128xbf16, #tpu.memory_space<vmem>>, %arg7: memref<1x128xf32, #tpu.memory_space<vmem>>, %arg8: memref<1x8x128xf32, #tpu.memory_space<vmem>>) attributes {dimension_semantics = [#tpu.dimension_semantics<parallel>], iteration_bounds = array<i64: 4>, scalar_prefetch = 0 : i64, scratch_operands = 0 : i64, tpu.core_type = #tpu.core_type<tc>, window_params = [{transform_indices = @transform_0, window_bounds = array<i64: 1, 8, 32>}, {pipeline_mode = #tpu.pipeline_mode<synchronous>, transform_indices = @transform_1, window_bounds = array<i64: 32, 256>}, {pipeline_mode = #tpu.pipeline_mode<synchronous>, transform_indices = @transform_2, window_bounds = array<i64: 2, 256>}, {pipeline_mode = #tpu.pipeline_mode<synchronous>, transform_indices = @transform_3, window_bounds = array<i64: 256, 128>}, {pipeline_mode = #tpu.pipeline_mode<synchronous>, transform_indices = @transform_4, window_bounds = array<i64: 2, 128>}, {pipeline_mode = #tpu.pipeline_mode<synchronous>, transform_indices = @transform_5, window_bounds = array<i64: 128, 128>}, {pipeline_mode = #tpu.pipeline_mode<synchronous>, transform_indices = @transform_6, window_bounds = array<i64: 1, 128>}, {transform_indices = @transform_7, window_bounds = array<i64: 1, 8, 128>}]} {
    %c0 = arith.constant 0 : index
    %c0_0 = arith.constant 0 : index
    %c0_1 = arith.constant 0 : index
    %0 = vector.load %arg1[%c0, %c0_0, %c0_1] : memref<1x8x32xf32, #tpu.memory_space<vmem>>, vector<1x8x32xf32>
    %1 = vector.shape_cast %0 : vector<1x8x32xf32> to vector<8x32xf32>
    %2 = arith.truncf %1 : vector<8x32xf32> to vector<8x32xbf16>
    %c0_2 = arith.constant 0 : index
    %c0_3 = arith.constant 0 : index
    %3 = vector.load %arg2[%c0_2, %c0_3] : memref<32x256xbf16, #tpu.memory_space<vmem>>, vector<32x256xbf16>
    %cst = arith.constant dense<0.000000e+00> : vector<8x256xf32>
    %4 = tpu.matmul %2, %3, %cst {dimension_numbers = #tpu.dot_dimension_numbers<[1], [0], [0], [1], [0, 0, 1, 1], [], []>} : vector<8x32xbf16>, vector<32x256xbf16>, vector<8x256xf32> -> vector<8x256xf32>
    %cst_4 = arith.constant dense<0.000000e+00> : vector<256xf32>
    %5 = vector.multi_reduction <add>, %4, %cst_4 [0] : vector<8x256xf32> to vector<256xf32>
    %6 = vector.shape_cast %5 : vector<256xf32> to vector<1x256xf32>
    %cst_5 = arith.constant 1.250000e-01 : f32
    %7 = vector.broadcast %cst_5 : f32 to vector<1x256xf32>
    %8 = arith.mulf %6, %7 : vector<1x256xf32>
    %9 = arith.mulf %4, %4 : vector<8x256xf32>
    %cst_6 = arith.constant dense<0.000000e+00> : vector<256xf32>
    %10 = vector.multi_reduction <add>, %9, %cst_6 [0] : vector<8x256xf32> to vector<256xf32>
    %11 = vector.shape_cast %10 : vector<256xf32> to vector<1x256xf32>
    %cst_7 = arith.constant 1.250000e-01 : f32
    %12 = vector.broadcast %cst_7 : f32 to vector<1x256xf32>
    %13 = arith.mulf %11, %12 : vector<1x256xf32>
    %14 = arith.mulf %8, %8 : vector<1x256xf32>
    %15 = arith.subf %13, %14 : vector<1x256xf32>
    %cst_8 = arith.constant 0.000000e+00 : f32
    %16 = vector.broadcast %cst_8 : f32 to vector<1x256xf32>
    %17 = arith.maximumf %15, %16 : vector<1x256xf32>
    %cst_9 = arith.constant 9.99999974E-6 : f32
    %18 = vector.broadcast %cst_9 : f32 to vector<1x256xf32>
    %19 = arith.addf %17, %18 : vector<1x256xf32>
    %20 = math.rsqrt %19 : vector<1x256xf32>
    %c0_10 = arith.constant 0 : index
    %c0_11 = arith.constant 0 : index
    %21 = vector.load %arg3[%c0_10, %c0_11] : memref<2x256xf32, #tpu.memory_space<vmem>>, vector<1x256xf32>
    %c1 = arith.constant 1 : index
    %c0_12 = arith.constant 0 : index
    %22 = vector.load %arg3[%c1, %c0_12] : memref<2x256xf32, #tpu.memory_space<vmem>>, vector<1x256xf32>
    %23 = arith.mulf %21, %20 : vector<1x256xf32>
    %24 = arith.mulf %8, %23 : vector<1x256xf32>
    %25 = arith.subf %22, %24 : vector<1x256xf32>
    %26 = vector.broadcast %23 : vector<1x256xf32> to vector<8x256xf32>
    %27 = arith.mulf %4, %26 : vector<8x256xf32>
    %28 = vector.broadcast %25 : vector<1x256xf32> to vector<8x256xf32>
    %29 = arith.addf %27, %28 : vector<8x256xf32>
    %cst_13 = arith.constant 0.000000e+00 : f32
    %30 = vector.broadcast %cst_13 : f32 to vector<8x256xf32>
    %31 = arith.maximumf %29, %30 : vector<8x256xf32>
    %32 = arith.truncf %31 : vector<8x256xf32> to vector<8x256xbf16>
    %c0_14 = arith.constant 0 : index
    %c0_15 = arith.constant 0 : index
    %33 = vector.load %arg4[%c0_14, %c0_15] : memref<256x128xbf16, #tpu.memory_space<vmem>>, vector<256x128xbf16>
    %cst_16 = arith.constant dense<0.000000e+00> : vector<8x128xf32>
    %34 = tpu.matmul %32, %33, %cst_16 {dimension_numbers = #tpu.dot_dimension_numbers<[1], [0], [0], [1], [0, 0, 1, 1], [], []>} : vector<8x256xbf16>, vector<256x128xbf16>, vector<8x128xf32> -> vector<8x128xf32>
    %cst_17 = arith.constant dense<0.000000e+00> : vector<128xf32>
    %35 = vector.multi_reduction <add>, %34, %cst_17 [0] : vector<8x128xf32> to vector<128xf32>
    %36 = vector.shape_cast %35 : vector<128xf32> to vector<1x128xf32>
    %cst_18 = arith.constant 1.250000e-01 : f32
    %37 = vector.broadcast %cst_18 : f32 to vector<1x128xf32>
    %38 = arith.mulf %36, %37 : vector<1x128xf32>
    %39 = arith.mulf %34, %34 : vector<8x128xf32>
    %cst_19 = arith.constant dense<0.000000e+00> : vector<128xf32>
    %40 = vector.multi_reduction <add>, %39, %cst_19 [0] : vector<8x128xf32> to vector<128xf32>
    %41 = vector.shape_cast %40 : vector<128xf32> to vector<1x128xf32>
    %cst_20 = arith.constant 1.250000e-01 : f32
    %42 = vector.broadcast %cst_20 : f32 to vector<1x128xf32>
    %43 = arith.mulf %41, %42 : vector<1x128xf32>
    %44 = arith.mulf %38, %38 : vector<1x128xf32>
    %45 = arith.subf %43, %44 : vector<1x128xf32>
    %cst_21 = arith.constant 0.000000e+00 : f32
    %46 = vector.broadcast %cst_21 : f32 to vector<1x128xf32>
    %47 = arith.maximumf %45, %46 : vector<1x128xf32>
    %cst_22 = arith.constant 9.99999974E-6 : f32
    %48 = vector.broadcast %cst_22 : f32 to vector<1x128xf32>
    %49 = arith.addf %47, %48 : vector<1x128xf32>
    %50 = math.rsqrt %49 : vector<1x128xf32>
    %c0_23 = arith.constant 0 : index
    %c0_24 = arith.constant 0 : index
    %51 = vector.load %arg5[%c0_23, %c0_24] : memref<2x128xf32, #tpu.memory_space<vmem>>, vector<1x128xf32>
    %c1_25 = arith.constant 1 : index
    %c0_26 = arith.constant 0 : index
    %52 = vector.load %arg5[%c1_25, %c0_26] : memref<2x128xf32, #tpu.memory_space<vmem>>, vector<1x128xf32>
    %53 = arith.mulf %51, %50 : vector<1x128xf32>
    %54 = arith.mulf %38, %53 : vector<1x128xf32>
    %55 = arith.subf %52, %54 : vector<1x128xf32>
    %56 = vector.broadcast %53 : vector<1x128xf32> to vector<8x128xf32>
    %57 = arith.mulf %34, %56 : vector<8x128xf32>
    %58 = vector.broadcast %55 : vector<1x128xf32> to vector<8x128xf32>
    %59 = arith.addf %57, %58 : vector<8x128xf32>
    %cst_27 = arith.constant 0.000000e+00 : f32
    %60 = vector.broadcast %cst_27 : f32 to vector<8x128xf32>
    %61 = arith.maximumf %59, %60 : vector<8x128xf32>
    %62 = arith.truncf %61 : vector<8x128xf32> to vector<8x128xbf16>
    %c0_28 = arith.constant 0 : index
    %c0_29 = arith.constant 0 : index
    %63 = vector.load %arg6[%c0_28, %c0_29] : memref<128x128xbf16, #tpu.memory_space<vmem>>, vector<128x128xbf16>
    %cst_30 = arith.constant dense<0.000000e+00> : vector<8x128xf32>
    %64 = tpu.matmul %62, %63, %cst_30 {dimension_numbers = #tpu.dot_dimension_numbers<[1], [0], [0], [1], [0, 0, 1, 1], [], []>} : vector<8x128xbf16>, vector<128x128xbf16>, vector<8x128xf32> -> vector<8x128xf32>
    %c0_31 = arith.constant 0 : index
    %c0_32 = arith.constant 0 : index
    %65 = vector.load %arg7[%c0_31, %c0_32] : memref<1x128xf32, #tpu.memory_space<vmem>>, vector<1x128xf32>
    %66 = vector.broadcast %65 : vector<1x128xf32> to vector<8x128xf32>
    %67 = arith.addf %64, %66 : vector<8x128xf32>
    %c0_33 = arith.constant 0 : index
    %c0_34 = arith.constant 0 : index
    %c0_35 = arith.constant 0 : index
    %68 = vector.load %arg8[%c0_33, %c0_34, %c0_35] : memref<1x8x128xf32, #tpu.memory_space<vmem>>, vector<1x8x128xf32>
    %69 = vector.shape_cast %68 : vector<1x8x128xf32> to vector<8x128xf32>
    %70 = vector.shape_cast %67 : vector<8x128xf32> to vector<1x8x128xf32>
    tpu.vector_store %arg8[%c0_33, %c0_34, %c0_35], %70 {strides = array<i32>} : memref<1x8x128xf32, #tpu.memory_space<vmem>>, vector<1x8x128xf32>,
    return
  }
  func.func @transform_0(%arg0: i32) -> (i32, i32, i32) {
    %c0_i32 = arith.constant 0 : i32
    %c0_i32_0 = arith.constant 0 : i32
    %c0_i32_1 = arith.constant 0 : i32
    return %arg0, %c0_i32, %c0_i32_0 : i32, i32, i32
  }
  func.func @transform_1(%arg0: i32) -> (i32, i32) {
    %c0_i32 = arith.constant 0 : i32
    %c0_i32_0 = arith.constant 0 : i32
    %c0_i32_1 = arith.constant 0 : i32
    return %c0_i32, %c0_i32_0 : i32, i32
  }
  func.func @transform_2(%arg0: i32) -> (i32, i32) {
    %c0_i32 = arith.constant 0 : i32
    %c0_i32_0 = arith.constant 0 : i32
    %c0_i32_1 = arith.constant 0 : i32
    return %c0_i32, %c0_i32_0 : i32, i32
  }
  func.func @transform_3(%arg0: i32) -> (i32, i32) {
    %c0_i32 = arith.constant 0 : i32
    %c0_i32_0 = arith.constant 0 : i32
    %c0_i32_1 = arith.constant 0 : i32
    return %c0_i32, %c0_i32_0 : i32, i32
  }
  func.func @transform_4(%arg0: i32) -> (i32, i32) {
    %c0_i32 = arith.constant 0 : i32
    %c0_i32_0 = arith.constant 0 : i32
    %c0_i32_1 = arith.constant 0 : i32
    return %c0_i32, %c0_i32_0 : i32, i32
  }
  func.func @transform_5(%arg0: i32) -> (i32, i32) {
    %c0_i32 = arith.constant 0 : i32
    %c0_i32_0 = arith.constant 0 : i32
    %c0_i32_1 = arith.constant 0 : i32
    return %c0_i32, %c0_i32_0 : i32, i32
  }
  func.func @transform_6(%arg0: i32) -> (i32, i32) {
    %c0_i32 = arith.constant 0 : i32
    %c0_i32_0 = arith.constant 0 : i32
    %c0_i32_1 = arith.constant 0 : i32
    return %c0_i32, %c0_i32_0 : i32, i32
  }
  func.func @transform_7(%arg0: i32) -> (i32, i32, i32) {
    %c0_i32 = arith.constant 0 : i32
    %c0_i32_0 = arith.constant 0 : i32
    %c0_i32_1 = arith.constant 0 : i32
    return %arg0, %c0_i32, %c0_i32_0 : i32, i32, i32
  }
}

</mosaic_0001>

<llo_original>
// kernel: tpu_custom_call.1
$region0: #{tpu_custom_call.1}
  #allocation0 [shape = 'u32[]', space=smem, size = 0x4, offset = 0x4, fixed_abs, tag = 'smem constant byte address 0x4 - core index']
  #allocation1 [shape = 'u32[144,128]{1,0:T(1,128)}', space=vmem, size = 0x12000, scoped, tag = 'internal scratch']
  %s0 = inlined_call_operand.hbm [shape: f32[4,8,32], index: 0, kind: input, shape index: {}]
  %s1 = inlined_call_operand.hbm [shape: bf16[32,256], index: 1, kind: input, shape index: {}]
  %s2 = inlined_call_operand.vmem [shape: f32[2,256], index: 2, kind: input, shape index: {}]
  %s3 = inlined_call_operand.hbm [shape: bf16[256,128], index: 3, kind: input, shape index: {}]
  %s4 = inlined_call_operand.vmem [shape: f32[2,128], index: 4, kind: input, shape index: {}]
  %s5 = inlined_call_operand.hbm [shape: bf16[128,128], index: 5, kind: input, shape index: {}]
  %s6 = inlined_call_operand.vmem [shape: f32[1,128], index: 6, kind: input, shape index: {}]
  %s7 = inlined_call_operand.hbm [shape: f32[4,8,128], index: 7, kind: output, shape index: {}]
  %s8 = sld [smem:[#allocation0]]
  $region77: #{tpu_custom_call.1} parent=0
    _
  %s10 = ssub.s32 1, %s8
  %s11 = scalar_select 0, %s10, %s8
  $region1: #{tpu_custom_call.1} parent=0
    #allocation2 [shape = 'u8[8192]{0}', space=vmem, size = 0x2000, scoped, tag = 'input window, operand 0']
    #allocation3 [shape = 's32[2]{0}', space=sflag, size = 0x8, scoped, tag = 'scoped memory for tpu_custom_call.1']
    #allocation4 [shape = 's32[2]{0}', space=sflag, size = 0x8, scoped, tag = 'scoped memory for tpu_custom_call.1']
    #allocation5 [shape = 'u8[16384]{0}', space=vmem, size = 0x4000, scoped, tag = 'input window, operand 1, single buffered']
    #allocation6 [shape = 's32[1]{0}', space=sflag, size = 0x4, scoped, tag = 'scoped memory for tpu_custom_call.1']
    #allocation7 [shape = 'u8[65536]{0}', space=vmem, size = 0x10000, scoped, tag = 'input window, operand 3, single buffered']
    #allocation8 [shape = 'u8[32768]{0}', space=vmem, size = 0x8000, scoped, tag = 'input window, operand 5, single buffered']
    #allocation9 [shape = 's32[1]{0}', space=sflag, size = 0x4, scoped, tag = 'scoped memory for tpu_custom_call.1']
    #allocation10 [shape = 'u8[8192]{0}', space=vmem, size = 0x2000, scoped, tag = 'output window, operand 0']
    %12 = vsyncpa [#allocation3], 0
    %s13 = scalar_lea.sflag [#allocation3], 1
    %14 = vsyncpa %s13, 0
    %15 = vsyncpa [#allocation6], 0
    %16 = vsyncpa [#allocation9], 0
    %17 = vsyncpa [#allocation4], 0
    %s18 = scalar_lea.sflag [#allocation4], 1
    %19 = vsyncpa %s18, 0
    loop: start=0, step=1, limit=6
    $region2: #{tpu_custom_call.1} parent=1 // loop_pre_header
      _
    $region3: #{tpu_custom_call.1} parent=1 // loop_header
      %s21 = sphi 0, %s25
      %p22 = scmp.ge.s32.totalorder %s21, 6
      %s31 = sphi 0, %s33
      %s34 = sphi 0, %s31
      %s35 = sphi 0, %s34
      %s51 = sphi 0, %s35
      %s55 = sphi 0, %s55
      %s57 = sphi 0, %s55
      %s58 = sphi 0, %s57
      %s72 = sphi 0, %s58
      %s76 = sphi 0, %s76
      %s78 = sphi 0, %s76
      %s79 = sphi 0, %s78
      %s93 = sphi 0, %s79
      %s97 = sphi 0, %s97
      %s99 = sphi 0, %s97
      %s100 = sphi 0, %s99
      %s114 = sphi 0, %s100
      %s118 = sphi 0, %s118
      %s120 = sphi 0, %s118
      %s121 = sphi 0, %s120
      %s135 = sphi 0, %s121
      %s139 = sphi 0, %s139
      %s141 = sphi 0, %s139
      %s142 = sphi 0, %s141
      %s156 = sphi 0, %s142
      %s160 = sphi 0, %s160
      %s162 = sphi 0, %s160
      %s163 = sphi 0, %s162
      %s177 = sphi 0, %s163
      %s183 = sphi 0, %s185
      %s186 = sphi 0, %s183
      %s187 = sphi 0, %s186
      %s203 = sphi 0, %s187
    $region4: #{tpu_custom_call.1} parent=1 // loop_header_branch
      %24 = sbr.rel (%p22) target = $region8
    $region5: #{tpu_custom_call.1} parent=1 // loop_body
      %s26 = ssub.s32 %s21, 1
      %s27 = ssub.s32 %s21, 2
      %s28 = sadd.s32 %s21, 1
      %s29 = ssub.s32 %s21, %s28
      %p30 = scmp.eq.s32.totalorder %s29, 0
      %s32 = sadd.s32 %s31, 1
      %s33 = scalar_select %p30, %s31, %s32
      %p36 = pneg %p30
      %p37 = scmp.eq.s32.totalorder %s21, 3
      %p38 = por %p36, %p37
      %p39 = scmp.ne.s32.totalorder %s31, %s34
      %p40 = scmp.eq.s32.totalorder %s21, 0
      %p41 = por %p39, %p40
      %p42 = scmp.ne.s32.totalorder %s31, %s34
      %p43 = scmp.eq.s32.totalorder %s26, 3
      %p44 = por %p42, %p43
      %p45 = scmp.ne.s32.totalorder %s34, %s35
      %p46 = scmp.eq.s32.totalorder %s26, 0
      %p47 = por %p45, %p46
      %p48 = scmp.ne.s32.totalorder %s34, %s35
      %p49 = scmp.eq.s32.totalorder %s27, 3
      %p50 = por %p48, %p49
      %p52 = scmp.ne.s32.totalorder %s35, %s51
      %p53 = scmp.eq.s32.totalorder %s27, 0
      %p54 = por %p52, %p53
      %s56 = sadd.s32 %s55, 1
      %p59 = scmp.eq.s32.totalorder %s21, 3
      %p60 = scmp.ne.s32.totalorder %s55, %s57
      %p61 = scmp.eq.s32.totalorder %s21, 0
      %p62 = por %p60, %p61
      %p63 = scmp.ne.s32.totalorder %s55, %s57
      %p64 = scmp.eq.s32.totalorder %s26, 3
      %p65 = por %p63, %p64
      %p66 = scmp.ne.s32.totalorder %s57, %s58
      %p67 = scmp.eq.s32.totalorder %s26, 0
      %p68 = por %p66, %p67
      %p69 = scmp.ne.s32.totalorder %s57, %s58
      %p70 = scmp.eq.s32.totalorder %s27, 3
      %p71 = por %p69, %p70
      %p73 = scmp.ne.s32.totalorder %s58, %s72
      %p74 = scmp.eq.s32.totalorder %s27, 0
      %p75 = por %p73, %p74
      %s77 = sadd.s32 %s76, 1
      %p80 = scmp.eq.s32.totalorder %s21, 3
      %p81 = scmp.ne.s32.totalorder %s76, %s78
      %p82 = scmp.eq.s32.totalorder %s21, 0
      %p83 = por %p81, %p82
      %p84 = scmp.ne.s32.totalorder %s76, %s78
      %p85 = scmp.eq.s32.totalorder %s26, 3
      %p86 = por %p84, %p85
      %p87 = scmp.ne.s32.totalorder %s78, %s79
      %p88 = scmp.eq.s32.totalorder %s26, 0
      %p89 = por %p87, %p88
      %p90 = scmp.ne.s32.totalorder %s78, %s79
      %p91 = scmp.eq.s32.totalorder %s27, 3
      %p92 = por %p90, %p91
      %p94 = scmp.ne.s32.totalorder %s79, %s93
      %p95 = scmp.eq.s32.totalorder %s27, 0
      %p96 = por %p94, %p95
      %s98 = sadd.s32 %s97, 1
      %p101 = scmp.eq.s32.totalorder %s21, 3
      %p102 = scmp.ne.s32.totalorder %s97, %s99
      %p103 = scmp.eq.s32.totalorder %s21, 0
      %p104 = por %p102, %p103
      %p105 = scmp.ne.s32.totalorder %s97, %s99
      %p106 = scmp.eq.s32.totalorder %s26, 3
      %p107 = por %p105, %p106
      %p108 = scmp.ne.s32.totalorder %s99, %s100
      %p109 = scmp.eq.s32.totalorder %s26, 0
      %p110 = por %p108, %p109
      %p111 = scmp.ne.s32.totalorder %s99, %s100
      %p112 = scmp.eq.s32.totalorder %s27, 3
      %p113 = por %p111, %p112
      %p115 = scmp.ne.s32.totalorder %s100, %s114
      %p116 = scmp.eq.s32.totalorder %s27, 0
      %p117 = por %p115, %p116
      %s119 = sadd.s32 %s118, 1
      %p122 = scmp.eq.s32.totalorder %s21, 3
      %p123 = scmp.ne.s32.totalorder %s118, %s120
      %p124 = scmp.eq.s32.totalorder %s21, 0
      %p125 = por %p123, %p124
      %p126 = scmp.ne.s32.totalorder %s118, %s120
      %p127 = scmp.eq.s32.totalorder %s26, 3
      %p128 = por %p126, %p127
      %p129 = scmp.ne.s32.totalorder %s120, %s121
      %p130 = scmp.eq.s32.totalorder %s26, 0
      %p131 = por %p129, %p130
      %p132 = scmp.ne.s32.totalorder %s120, %s121
      %p133 = scmp.eq.s32.totalorder %s27, 3
      %p134 = por %p132, %p133
      %p136 = scmp.ne.s32.totalorder %s121, %s135
      %p137 = scmp.eq.s32.totalorder %s27, 0
      %p138 = por %p136, %p137
      %s140 = sadd.s32 %s139, 1
      %p143 = scmp.eq.s32.totalorder %s21, 3
      %p144 = scmp.ne.s32.totalorder %s139, %s141
      %p145 = scmp.eq.s32.totalorder %s21, 0
      %p146 = por %p144, %p145
      %p147 = scmp.ne.s32.totalorder %s139, %s141
      %p148 = scmp.eq.s32.totalorder %s26, 3
      %p149 = por %p147, %p148
      %p150 = scmp.ne.s32.totalorder %s141, %s142
      %p151 = scmp.eq.s32.totalorder %s26, 0
      %p152 = por %p150, %p151
      %p153 = scmp.ne.s32.totalorder %s141, %s142
      %p154 = scmp.eq.s32.totalorder %s27, 3
      %p155 = por %p153, %p154
      %p157 = scmp.ne.s32.totalorder %s142, %s156
      %p158 = scmp.eq.s32.totalorder %s27, 0
      %p159 = por %p157, %p158
      %s161 = sadd.s32 %s160, 1
      %p164 = scmp.eq.s32.totalorder %s21, 3
      %p165 = scmp.ne.s32.totalorder %s160, %s162
      %p166 = scmp.eq.s32.totalorder %s21, 0
      %p167 = por %p165, %p166
      %p168 = scmp.ne.s32.totalorder %s160, %s162
      %p169 = scmp.eq.s32.totalorder %s26, 3
      %p170 = por %p168, %p169
      %p171 = scmp.ne.s32.totalorder %s162, %s163
      %p172 = scmp.eq.s32.totalorder %s26, 0
      %p173 = por %p171, %p172
      %p174 = scmp.ne.s32.totalorder %s162, %s163
      %p175 = scmp.eq.s32.totalorder %s27, 3
      %p176 = por %p174, %p175
      %p178 = scmp.ne.s32.totalorder %s163, %s177
      %p179 = scmp.eq.s32.totalorder %s27, 0
      %p180 = por %p178, %p179
      %s181 = ssub.s32 %s21, %s28
      %p182 = scmp.eq.s32.totalorder %s181, 0
      %s184 = sadd.s32 %s183, 1
      %s185 = scalar_select %p182, %s183, %s184
      %p188 = pneg %p182
      %p189 = scmp.eq.s32.totalorder %s21, 3
      %p190 = por %p188, %p189
      %p191 = scmp.ne.s32.totalorder %s183, %s186
      %p192 = scmp.eq.s32.totalorder %s21, 0
      %p193 = por %p191, %p192
      %p194 = scmp.ne.s32.totalorder %s183, %s186
      %p195 = scmp.eq.s32.totalorder %s26, 3
      %p196 = por %p194, %p195
      %p197 = scmp.ne.s32.totalorder %s186, %s187
      %p198 = scmp.eq.s32.totalorder %s26, 0
      %p199 = por %p197, %p198
      %p200 = scmp.ne.s32.totalorder %s186, %s187
      %p201 = scmp.eq.s32.totalorder %s27, 3
      %p202 = por %p200, %p201
      %p204 = scmp.ne.s32.totalorder %s187, %s203
      %p205 = scmp.eq.s32.totalorder %s27, 0
      %p206 = por %p204, %p205
      %p207 = scmp.le.s32.totalorder 1, %s21
      %p208 = scmp.lt.s32.totalorder %s21, 5
      %p209 = pnand %p207, %p208
      %p210 = pneg %p209
      // Predicated region
      $region9: #{tpu_custom_call.1} parent=5 // pred_check
        _
      $region10: #{tpu_custom_call.1} parent=5 // pred_check_branch
        %212 = sbr.rel (%p209) target = $region12
      $region11: #{tpu_custom_call.1} parent=5 // pred_region
        %s213 = ssub.s32 %s21, 1
        // Predicated region
        $region13: #{tpu_custom_call.1} parent=11 // pred_check
          %p214 = pneg %p68
        $region14: #{tpu_custom_call.1} parent=11 // pred_check_branch
          %216 = sbr.rel (%p214) target = $region16
        $region15: #{tpu_custom_call.1} parent=11 // pred_region
          %s218 = ssub.s32 512, 512
          %219 = vsyncadd [#allocation6], %s218
          %s220 = sshll.u32 [#allocation5], 4
          %s221 = int_to_ptr.vmem [resolvable:$true] %s220
          %226 = dma.hbm_to_vmem [thread:$0]  %s1, 512, %s221, [#allocation6], 128, 128, 8
        $region16: #{tpu_custom_call.1} parent=11 // pred_fallthru
          _
        // Predicated region
        $region17: #{tpu_custom_call.1} parent=11 // pred_check
          %p227 = pneg %p89
        $region18: #{tpu_custom_call.1} parent=11 // pred_check_branch
          %229 = sbr.rel (%p227) target = $region20
        $region19: #{tpu_custom_call.1} parent=11 // pred_region
          _
        $region20: #{tpu_custom_call.1} parent=11 // pred_fallthru
          _
        // Predicated region
        $region21: #{tpu_custom_call.1} parent=11 // pred_check
          %p230 = pneg %p110
        $region22: #{tpu_custom_call.1} parent=11 // pred_check_branch
          %232 = sbr.rel (%p230) target = $region24
        $region23: #{tpu_custom_call.1} parent=11 // pred_region
          %s234 = ssub.s32 2048, 2048
          %235 = vsyncadd [#allocation6], %s234
          %s236 = sshll.u32 [#allocation7], 4
          %s237 = int_to_ptr.vmem [resolvable:$true] %s236
          %242 = dma.hbm_to_vmem [thread:$0]  %s3, 2048, %s237, [#allocation6], 64, 64, 4
        $region24: #{tpu_custom_call.1} parent=11 // pred_fallthru
          _
        // Predicated region
        $region25: #{tpu_custom_call.1} parent=11 // pred_check
          %p243 = pneg %p131
        $region26: #{tpu_custom_call.1} parent=11 // pred_check_branch
          %245 = sbr.rel (%p243) target = $region28
        $region27: #{tpu_custom_call.1} parent=11 // pred_region
          _
        $region28: #{tpu_custom_call.1} parent=11 // pred_fallthru
          _
        // Predicated region
        $region29: #{tpu_custom_call.1} parent=11 // pred_check
          %p246 = pneg %p152
        $region30: #{tpu_custom_call.1} parent=11 // pred_check_branch
          %248 = sbr.rel (%p246) target = $region32
        $region31: #{tpu_custom_call.1} parent=11 // pred_region
          %s250 = ssub.s32 1024, 1024
          %251 = vsyncadd [#allocation9], %s250
          %s252 = sshll.u32 [#allocation8], 4
          %s253 = int_to_ptr.vmem [resolvable:$true] %s252
          %258 = dma.hbm_to_vmem [thread:$0]  %s5, 1024, %s253, [#allocation9], 64, 64, 4
        $region32: #{tpu_custom_call.1} parent=11 // pred_fallthru
          _
        // Predicated region
        $region33: #{tpu_custom_call.1} parent=11 // pred_check
          %p259 = pneg %p173
        $region34: #{tpu_custom_call.1} parent=11 // pred_check_branch
          %261 = sbr.rel (%p259) target = $region36
        $region35: #{tpu_custom_call.1} parent=11 // pred_region
          _
        $region36: #{tpu_custom_call.1} parent=11 // pred_fallthru
          _
      $region12: #{tpu_custom_call.1} parent=5 // pred_fallthru
        _
      %p262 = scmp.lt.s32.totalorder %s21, 4
      // Predicated region
      $region37: #{tpu_custom_call.1} parent=5 // pred_check
        %p263 = pneg %p262
      $region38: #{tpu_custom_call.1} parent=5 // pred_check_branch
        %265 = sbr.rel (%p263) target = $region40
      $region39: #{tpu_custom_call.1} parent=5 // pred_region
        // Predicated region
        $region41: #{tpu_custom_call.1} parent=39 // pred_check
          %p266 = pneg %p41
        $region42: #{tpu_custom_call.1} parent=39 // pred_check_branch
          %268 = sbr.rel (%p266) target = $region44
        $region43: #{tpu_custom_call.1} parent=39 // pred_region
          %s269 = sand.u32 %s31, 1
          %s270 = scalar_lea.sflag [#allocation3], %s269
          %s271 = sand.u32 %s31, 1
          %s272 = smul.addr %s271, 8
          %s273 = scalar_lea.vmem [#allocation2], %s272
          %s275 = ssub.s32 128, 128
          %276 = vsyncadd %s270, %s275
          %s277 = smul.addr %s21, 128
          %s278 = scalar_lea.hbm %s0, %s277
          %s280 = sshll.u32 %s273, 4
          %s281 = int_to_ptr.vmem [resolvable:$true] %s280
          %283 = dma.hbm_to_vmem [thread:$0]  %s278, 128, %s281, %s270
        $region44: #{tpu_custom_call.1} parent=39 // pred_fallthru
          _
      $region40: #{tpu_custom_call.1} parent=5 // pred_fallthru
        _
      %p284 = scmp.le.s32.totalorder 1, %s21
      %p285 = scmp.lt.s32.totalorder %s21, 5
      %p286 = pnand %p284, %p285
      %p287 = pneg %p286
      // Predicated region
      $region45: #{tpu_custom_call.1} parent=5 // pred_check
        _
      $region46: #{tpu_custom_call.1} parent=5 // pred_check_branch
        %289 = sbr.rel (%p286) target = $region48
      $region47: #{tpu_custom_call.1} parent=5 // pred_region
        %s290 = ssub.s32 %s21, 1
        %s291 = sand.u32 %s34, 1
        %s292 = scalar_lea.sflag [#allocation3], %s291
        %s293 = sand.u32 %s34, 1
        %s294 = smul.addr %s293, 8
        %s295 = scalar_lea.vmem [#allocation2], %s294
        // Predicated region
        $region49: #{tpu_custom_call.1} parent=47 // pred_check
          %p296 = pneg %p47
        $region50: #{tpu_custom_call.1} parent=47 // pred_check_branch
          %298 = sbr.rel (%p296) target = $region52
        $region51: #{tpu_custom_call.1} parent=47 // pred_region
          %299 = dma.done %s292, 128
        $region52: #{tpu_custom_call.1} parent=47 // pred_fallthru
          _
        // Predicated region
        $region53: #{tpu_custom_call.1} parent=47 // pred_check
          %p300 = pneg %p68
        $region54: #{tpu_custom_call.1} parent=47 // pred_check_branch
          %302 = sbr.rel (%p300) target = $region56
        $region55: #{tpu_custom_call.1} parent=47 // pred_region
          %303 = dma.done [#allocation6], 512
        $region56: #{tpu_custom_call.1} parent=47 // pred_fallthru
          _
        // Predicated region
        $region57: #{tpu_custom_call.1} parent=47 // pred_check
          %p304 = pneg %p110
        $region58: #{tpu_custom_call.1} parent=47 // pred_check_branch
          %306 = sbr.rel (%p304) target = $region60
        $region59: #{tpu_custom_call.1} parent=47 // pred_region
          %307 = dma.done [#allocation6], 2048
        $region60: #{tpu_custom_call.1} parent=47 // pred_fallthru
          _
        // Predicated region
        $region61: #{tpu_custom_call.1} parent=47 // pred_check
          %p308 = pneg %p152
        $region62: #{tpu_custom_call.1} parent=47 // pred_check_branch
          %310 = sbr.rel (%p308) target = $region64
        $region63: #{tpu_custom_call.1} parent=47 // pred_region
          %311 = dma.done [#allocation9], 1024
        $region64: #{tpu_custom_call.1} parent=47 // pred_fallthru
          _
        %s312 = sand.u32 %s34, 1
        %s313 = scalar_lea.sflag [#allocation3], %s312
        %s314 = sand.u32 %s34, 1
        %s315 = smul.addr %s314, 8
        %s316 = scalar_lea.vmem [#allocation2], %s315
        %p317 = pneg %p47
        %p318 = pneg %p44
        %p319 = pneg %p68
        %p320 = pneg %p65
        %p321 = pneg %p89
        %p322 = pneg %p86
        %p323 = pneg %p110
        %p324 = pneg %p107
        %p325 = pneg %p131
        %p326 = pneg %p128
        %p327 = pneg %p152
        %p328 = pneg %p149
        %p329 = pneg %p173
        %p330 = pneg %p170
        %p331 = pneg %p199
        %p332 = pneg %p196
        %s333 = sand.u32 %s186, 1
        %s334 = scalar_lea.sflag [#allocation4], %s333
        %s335 = sand.u32 %s186, 1
        %s336 = smul.addr %s335, 8
        %s337 = scalar_lea.vmem [#allocation10], %s336
        %v339 = vld [vmem:[%s295] sm:$0xff]
        %v340 = vpack.c.bf16 %v339, %v339
        %v341 = vld [vmem:[#allocation5] sm:$0xff]
        %v342 = vld [vmem:[#allocation5 + $0x8] sm:$0xff]
        %v343 = vld [vmem:[#allocation5 + $0x10] sm:$0xff]
        %v344 = vld [vmem:[#allocation5 + $0x18] sm:$0xff]
        %v349 = vunpack.c.l.b16 %v341
        %v350 = vunpack.c.h.b16 %v341
        %v351 = vunpack.c.l.b16 %v342
        %v352 = vunpack.c.h.b16 %v342
        %v353 = vunpack.c.l.b16 %v343
        %v354 = vunpack.c.h.b16 %v343
        %v355 = vunpack.c.l.b16 %v344
        %v356 = vunpack.c.h.b16 %v344
        %v357 = vpack.c.b16 %v351, %v349
        %v358 = vpack.c.b16 %v352, %v350
        %v359 = vpack.c.b16 %v355, %v353
        %v360 = vpack.c.b16 %v356, %v354
        %vm365 = vcmask 261120
        %v367 = vsel %vm365, %v340, 0
        %369 = vmatprep.subr.bf16.mxu0 %v358
        %370 = vmatpush1.bf16.msra.mxu0 %v357
        %371 = vmatprep.subr.bf16.mxu0 %v360
        %372 = vmatpush1.bf16.msra.mxu0 %v359
        %373 = vmatprep.subr.bf16.mxu0 0
        %374 = vmatpush1.bf16.msra.mxu0 0
        %375 = vmatprep.subr.bf16.mxu0 0
        %376 = vmatpush1.bf16.msra.mxu0 0
        %377 = vmatprep.subr.bf16.mxu0 0
        %378 = vmatpush1.bf16.msra.mxu0 0
        %379 = vmatprep.subr.bf16.mxu0 0
        %380 = vmatpush1.bf16.msra.mxu0 0
        %381 = vmatprep.subr.bf16.mxu0 0
        %382 = vmatpush1.bf16.msra.mxu0 0
        %383 = vmatprep.subr.bf16.mxu0 0
        %384 = vmatpush1.bf16.msra.mxu0 0
        %385 = vmatprep.subr.bf16.mxu0 0
        %386 = vmatpush1.bf16.msra.mxu0 0
        %387 = vmatprep.subr.bf16.mxu0 0
        %388 = vmatpush1.bf16.msra.mxu0 0
        %389 = vmatprep.subr.bf16.mxu0 0
        %390 = vmatpush1.bf16.msra.mxu0 0
        %391 = vmatprep.subr.bf16.mxu0 0
        %392 = vmatpush1.bf16.msra.mxu0 0
        %393 = vmatprep.subr.bf16.mxu0 0
        %394 = vmatpush1.bf16.msra.mxu0 0
        %395 = vmatprep.subr.bf16.mxu0 0
        %396 = vmatpush1.bf16.msra.mxu0 0
        %397 = vmatprep.subr.bf16.mxu0 0
        %398 = vmatpush1.bf16.msra.mxu0 0
        %399 = vmatprep.subr.bf16.mxu0 0
        %400 = vmatpush1.bf16.msra.mxu0 0
        %401 = vmatprep.mubr.bf16.mxu0 0
        %402 = vmatmul.mubr.bf16.gmra.mrb[0].mxu0 %v367
        %v403 = vpop.f32.mrb[0].mxu0
        %v404 = vadd.f32 0.0, %v403
        %v405 = vpop.f32.mrb[0].mxu0
        %v406 = vadd.f32 0.0, %v405
        %v407 = vpop.f32.mrb[0].mxu0
        %v408 = vpop.f32.mrb[0].mxu0
        %409 = vdwg.mxu0
        %v410 = vrot.slane %v404, 4
        %v411 = vadd.f32 %v404, %v410
        %v412 = vrot.slane %v411, 2
        %v413 = vadd.f32 %v411, %v412
        %v414 = vrot.slane %v413, 1
        %v415 = vadd.f32 %v413, %v414
        %v416 = vrot.slane %v406, 4
        %v417 = vadd.f32 %v406, %v416
        %v418 = vrot.slane %v417, 2
        %v419 = vadd.f32 %v417, %v418
        %v420 = vrot.slane %v419, 1
        %v421 = vadd.f32 %v419, %v420
        %v422 = vmul.f32 %v415, 0.125
        %v423 = vmul.f32 %v421, 0.125
        %v424 = vmul.f32 %v404, %v404
        %v425 = vmul.f32 %v406, %v406
        %v426 = vrot.slane %v424, 4
        %v427 = vadd.f32 %v424, %v426
        %v428 = vrot.slane %v427, 2
        %v429 = vadd.f32 %v427, %v428
        %v430 = vrot.slane %v429, 1
        %v431 = vadd.f32 %v429, %v430
        %v432 = vrot.slane %v425, 4
        %v433 = vadd.f32 %v425, %v432
        %v434 = vrot.slane %v433, 2
        %v435 = vadd.f32 %v433, %v434
        %v436 = vrot.slane %v435, 1
        %v437 = vadd.f32 %v435, %v436
        %v438 = vmul.f32 %v431, 0.125
        %v439 = vmul.f32 %v437, 0.125
        %v440 = vmul.f32 %v422, %v422
        %v441 = vmul.f32 %v423, %v423
        %v442 = vsub.f32 %v438, %v440
        %v443 = vsub.f32 %v439, %v441
        %v444 = vmax.f32 %v442, 0.0
        %v445 = vmax.f32 %v443, 0.0
        %v446 = vadd.f32 %v444, 1e-05
        %v447 = vadd.f32 %v445, 1e-05
        %v448 = vrsqrt.pop %v446
        %v449 = vrsqrt.pop %v447
        %v450 = vld [vmem:[%s2] ss:$2 sm:$0x3]
        %s451 = scalar_lea.vmem %s2, 1
        %v452 = vld [vmem:[%s451] ss:$2 sm:$0x3]
        %v455 = vcombine.low %v448, %v449
        %v457 = vunpack.c.l.s4 1966171168
        %v458 = vunpack.c.0.s8 %v457
        %v459 = vlaneseq
        %v460 = vshrl.u32 %v459, 7
        %v461 = vsub.s32 %v458, %v460
        %v462 = vrot.slane %v455, %v461
        %v464 = vunpack.c.l.s4 1966171168
        %v465 = vunpack.c.0.s8 %v464
        %v466 = vlaneseq
        %v467 = vshrl.u32 %v466, 7
        %v468 = vsub.s32 %v465, %v467
        %v469 = vrot.slane %v462, %v468
        %v471 = vmul.f32 %v450, %v469
        %v473 = vlaneseq
        %v474 = vshrl.u32 %v473, 7
        %v475 = vsub.s32 0, %v474
        %v476 = vrot.slane %v471, %v475
        %v477 = vlaneseq
        %v478 = vshrl.u32 %v477, 7
        %v479 = vsub.s32 1, %v478
        %v480 = vrot.slane %v471, %v479
        %v483 = vmul.f32 %v422, %v476
        %v484 = vmul.f32 %v423, %v480
        %v487 = vcombine.low %v483, %v484
        %v489 = vunpack.c.l.s4 1966171168
        %v490 = vunpack.c.0.s8 %v489
        %v491 = vlaneseq
        %v492 = vshrl.u32 %v491, 7
        %v493 = vsub.s32 %v490, %v492
        %v494 = vrot.slane %v487, %v493
        %v496 = vunpack.c.l.s4 1966171168
        %v497 = vunpack.c.0.s8 %v496
        %v498 = vlaneseq
        %v499 = vshrl.u32 %v498, 7
        %v500 = vsub.s32 %v497, %v499
        %v501 = vrot.slane %v494, %v500
        %v503 = vsub.f32 %v452, %v501
        %v504 = vmul.f32 %v404, %v476
        %v505 = vmul.f32 %v406, %v480
        %v507 = vlaneseq
        %v508 = vshrl.u32 %v507, 7
        %v509 = vsub.s32 0, %v508
        %v510 = vrot.slane %v503, %v509
        %v511 = vlaneseq
        %v512 = vshrl.u32 %v511, 7
        %v513 = vsub.s32 1, %v512
        %v514 = vrot.slane %v503, %v513
        %v517 = vadd.f32 %v504, %v510
        %v518 = vadd.f32 %v505, %v514
        %v519 = vmax.f32 %v517, 0.0
        %v520 = vmax.f32 %v518, 0.0
        %v521 = vpack.c.bf16 %v519, %v519
        %v522 = vpack.c.bf16 %v520, %v520
        %v523 = vld [vmem:[#allocation7] sm:$0xf]
        %v524 = vld [vmem:[#allocation7 + $0x4] sm:$0xf]
        %v525 = vld [vmem:[#allocation7 + $0x8] sm:$0xf]
        %v526 = vld [vmem:[#allocation7 + $0xc] sm:$0xf]
        %v527 = vld [vmem:[#allocation7 + $0x10] sm:$0xf]
        %v528 = vld [vmem:[#allocation7 + $0x14] sm:$0xf]
        %v529 = vld [vmem:[#allocation7 + $0x18] sm:$0xf]
        %v530 = vld [vmem:[#allocation7 + $0x1c] sm:$0xf]
        %v531 = vld [vmem:[#allocation7 + $0x20] sm:$0xf]
        %v532 = vld [vmem:[#allocation7 + $0x24] sm:$0xf]
        %v533 = vld [vmem:[#allocation7 + $0x28] sm:$0xf]
        %v534 = vld [vmem:[#allocation7 + $0x2c] sm:$0xf]
        %v535 = vld [vmem:[#allocation7 + $0x30] sm:$0xf]
        %v536 = vld [vmem:[#allocation7 + $0x34] sm:$0xf]
        %v537 = vld [vmem:[#allocation7 + $0x38] sm:$0xf]
        %v538 = vld [vmem:[#allocation7 + $0x3c] sm:$0xf]
        %v539 = vld [vmem:[#allocation7 + $0x40] sm:$0xf]
        %v540 = vld [vmem:[#allocation7 + $0x44] sm:$0xf]
        %v541 = vld [vmem:[#allocation7 + $0x48] sm:$0xf]
        %v542 = vld [vmem:[#allocation7 + $0x4c] sm:$0xf]
        %v543 = vld [vmem:[#allocation7 + $0x50] sm:$0xf]
        %v544 = vld [vmem:[#allocation7 + $0x54] sm:$0xf]
        %v545 = vld [vmem:[#allocation7 + $0x58] sm:$0xf]
        %v546 = vld [vmem:[#allocation7 + $0x5c] sm:$0xf]
        %v547 = vld [vmem:[#allocation7 + $0x60] sm:$0xf]
        %v548 = vld [vmem:[#allocation7 + $0x64] sm:$0xf]
        %v549 = vld [vmem:[#allocation7 + $0x68] sm:$0xf]
        %v550 = vld [vmem:[#allocation7 + $0x6c] sm:$0xf]
        %v551 = vld [vmem:[#allocation7 + $0x70] sm:$0xf]
        %v552 = vld [vmem:[#allocation7 + $0x74] sm:$0xf]
        %v553 = vld [vmem:[#allocation7 + $0x78] sm:$0xf]
        %v554 = vld [vmem:[#allocation7 + $0x7c] sm:$0xf]
        %v587 = vunpack.c.l.b16 %v523
        %v588 = vunpack.c.l.b16 %v524
        %v589 = vunpack.c.l.b16 %v525
        %v590 = vunpack.c.l.b16 %v526
        %v591 = vunpack.c.l.b16 %v527
        %v592 = vunpack.c.l.b16 %v528
        %v593 = vunpack.c.l.b16 %v529
        %v594 = vunpack.c.l.b16 %v530
        %v595 = vunpack.c.l.b16 %v531
        %v596 = vunpack.c.l.b16 %v532
        %v597 = vunpack.c.l.b16 %v533
        %v598 = vunpack.c.l.b16 %v534
        %v599 = vunpack.c.l.b16 %v535
        %v600 = vunpack.c.l.b16 %v536
        %v601 = vunpack.c.l.b16 %v537
        %v602 = vunpack.c.l.b16 %v538
        %v603 = vunpack.c.l.b16 %v539
        %v604 = vunpack.c.l.b16 %v540
        %v605 = vunpack.c.l.b16 %v541
        %v606 = vunpack.c.l.b16 %v542
        %v607 = vunpack.c.l.b16 %v543
        %v608 = vunpack.c.l.b16 %v544
        %v609 = vunpack.c.l.b16 %v545
        %v610 = vunpack.c.l.b16 %v546
        %v611 = vunpack.c.l.b16 %v547
        %v612 = vunpack.c.l.b16 %v548
        %v613 = vunpack.c.l.b16 %v549
        %v614 = vunpack.c.l.b16 %v550
        %v615 = vunpack.c.l.b16 %v551
        %v616 = vunpack.c.l.b16 %v552
        %v617 = vunpack.c.l.b16 %v553
        %v618 = vunpack.c.l.b16 %v554
        %v619 = vpack.c.b16 %v588, %v587
        %v620 = vpack.c.b16 %v590, %v589
        %v621 = vpack.c.b16 %v592, %v591
        %v622 = vpack.c.b16 %v594, %v593
        %v623 = vpack.c.b16 %v596, %v595
        %v624 = vpack.c.b16 %v598, %v597
        %v625 = vpack.c.b16 %v600, %v599
        %v626 = vpack.c.b16 %v602, %v601
        %v627 = vpack.c.b16 %v604, %v603
        %v628 = vpack.c.b16 %v606, %v605
        %v629 = vpack.c.b16 %v608, %v607
        %v630 = vpack.c.b16 %v610, %v609
        %v631 = vpack.c.b16 %v612, %v611
        %v632 = vpack.c.b16 %v614, %v613
        %v633 = vpack.c.b16 %v616, %v615
        %v634 = vpack.c.b16 %v618, %v617
        %651 = vmatprep.subr.bf16.mxu0 0
        %652 = vmatpush1.bf16.msra.mxu0 %v619
        %653 = vmatprep.subr.bf16.mxu0 0
        %654 = vmatpush1.bf16.msra.mxu0 %v620
        %655 = vmatprep.subr.bf16.mxu0 0
        %656 = vmatpush1.bf16.msra.mxu0 %v621
        %657 = vmatprep.subr.bf16.mxu0 0
        %658 = vmatpush1.bf16.msra.mxu0 %v622
        %659 = vmatprep.subr.bf16.mxu0 0
        %660 = vmatpush1.bf16.msra.mxu0 %v623
        %661 = vmatprep.subr.bf16.mxu0 0
        %662 = vmatpush1.bf16.msra.mxu0 %v624
        %663 = vmatprep.subr.bf16.mxu0 0
        %664 = vmatpush1.bf16.msra.mxu0 %v625
        %665 = vmatprep.subr.bf16.mxu0 0
        %666 = vmatpush1.bf16.msra.mxu0 %v626
        %667 = vmatprep.subr.bf16.mxu0 0
        %668 = vmatpush1.bf16.msra.mxu0 %v627
        %669 = vmatprep.subr.bf16.mxu0 0
        %670 = vmatpush1.bf16.msra.mxu0 %v628
        %671 = vmatprep.subr.bf16.mxu0 0
        %672 = vmatpush1.bf16.msra.mxu0 %v629
        %673 = vmatprep.subr.bf16.mxu0 0
        %674 = vmatpush1.bf16.msra.mxu0 %v630
        %675 = vmatprep.subr.bf16.mxu0 0
        %676 = vmatpush1.bf16.msra.mxu0 %v631
        %677 = vmatprep.subr.bf16.mxu0 0
        %678 = vmatpush1.bf16.msra.mxu0 %v632
        %679 = vmatprep.subr.bf16.mxu0 0
        %680 = vmatpush1.bf16.msra.mxu0 %v633
        %681 = vmatprep.subr.bf16.mxu0 0
        %682 = vmatpush1.bf16.msra.mxu0 %v634
        %683 = vmatprep.mubr.bf16.mxu0 %v522
        %684 = vmatmul.mubr.bf16.gmra.mrb[0].mxu0 %v521
        %v685 = vpop.f32.mrb[0].mxu0
        %v686 = vadd.f32 0.0, %v685
        %v687 = vpop.f32.mrb[0].mxu0
        %v688 = vpop.f32.mrb[0].mxu0
        %v689 = vpop.f32.mrb[0].mxu0
        %690 = vdwg.mxu0
        %v691 = vrot.slane %v686, 4
        %v692 = vadd.f32 %v686, %v691
        %v693 = vrot.slane %v692, 2
        %v694 = vadd.f32 %v692, %v693
        %v695 = vrot.slane %v694, 1
        %v696 = vadd.f32 %v694, %v695
        %v697 = vmul.f32 %v696, 0.125
        %v698 = vmul.f32 %v686, %v686
        %v699 = vrot.slane %v698, 4
        %v700 = vadd.f32 %v698, %v699
        %v701 = vrot.slane %v700, 2
        %v702 = vadd.f32 %v700, %v701
        %v703 = vrot.slane %v702, 1
        %v704 = vadd.f32 %v702, %v703
        %v705 = vmul.f32 %v704, 0.125
        %v706 = vmul.f32 %v697, %v697
        %v707 = vsub.f32 %v705, %v706
        %v708 = vmax.f32 %v707, 0.0
        %v709 = vadd.f32 %v708, 1e-05
        %v710 = vrsqrt.pop %v709
        %v711 = vld [vmem:[%s4] sm:$0x1]
        %v712 = vld [vmem:[%s4 + $0x1] sm:$0x1]
        %v713 = vmul.f32 %v711, %v710
        %v714 = vmul.f32 %v697, %v713
        %v715 = vsub.f32 %v712, %v714
        %v716 = vlaneseq
        %v717 = vshrl.u32 %v716, 7
        %v718 = vsub.s32 0, %v717
        %v719 = vrot.slane %v713, %v718
        %v720 = vmul.f32 %v686, %v719
        %v721 = vlaneseq
        %v722 = vshrl.u32 %v721, 7
        %v723 = vsub.s32 0, %v722
        %v724 = vrot.slane %v715, %v723
        %v725 = vadd.f32 %v720, %v724
        %v726 = vmax.f32 %v725, 0.0
        %v727 = vpack.c.bf16 %v726, %v726
        %v728 = vld [vmem:[#allocation8] sm:$0xf]
        %v729 = vld [vmem:[#allocation8 + $0x4] sm:$0xf]
        %v730 = vld [vmem:[#allocation8 + $0x8] sm:$0xf]
        %v731 = vld [vmem:[#allocation8 + $0xc] sm:$0xf]
        %v732 = vld [vmem:[#allocation8 + $0x10] sm:$0xf]
        %v733 = vld [vmem:[#allocation8 + $0x14] sm:$0xf]
        %v734 = vld [vmem:[#allocation8 + $0x18] sm:$0xf]
        %v735 = vld [vmem:[#allocation8 + $0x1c] sm:$0xf]
        %v736 = vld [vmem:[#allocation8 + $0x20] sm:$0xf]
        %v737 = vld [vmem:[#allocation8 + $0x24] sm:$0xf]
        %v738 = vld [vmem:[#allocation8 + $0x28] sm:$0xf]
        %v739 = vld [vmem:[#allocation8 + $0x2c] sm:$0xf]
        %v740 = vld [vmem:[#allocation8 + $0x30] sm:$0xf]
        %v741 = vld [vmem:[#allocation8 + $0x34] sm:$0xf]
        %v742 = vld [vmem:[#allocation8 + $0x38] sm:$0xf]
        %v743 = vld [vmem:[#allocation8 + $0x3c] sm:$0xf]
        %v744 = vld [vmem:[%s6] sm:$0x1]
        %v746 = vlaneseq
        %v747 = vshrl.u32 %v746, 7
        %v748 = vsub.s32 0, %v747
        %v749 = vrot.slane %v744, %v748
        %v767 = vunpack.c.l.b16 %v728
        %v768 = vunpack.c.l.b16 %v729
        %v769 = vunpack.c.l.b16 %v730
        %v770 = vunpack.c.l.b16 %v731
        %v771 = vunpack.c.l.b16 %v732
        %v772 = vunpack.c.l.b16 %v733
        %v773 = vunpack.c.l.b16 %v734
        %v774 = vunpack.c.l.b16 %v735
        %v775 = vunpack.c.l.b16 %v736
        %v776 = vunpack.c.l.b16 %v737
        %v777 = vunpack.c.l.b16 %v738
        %v778 = vunpack.c.l.b16 %v739
        %v779 = vunpack.c.l.b16 %v740
        %v780 = vunpack.c.l.b16 %v741
        %v781 = vunpack.c.l.b16 %v742
        %v782 = vunpack.c.l.b16 %v743
        %v783 = vpack.c.b16 %v768, %v767
        %v784 = vpack.c.b16 %v770, %v769
        %v785 = vpack.c.b16 %v772, %v771
        %v786 = vpack.c.b16 %v774, %v773
        %v787 = vpack.c.b16 %v776, %v775
        %v788 = vpack.c.b16 %v778, %v777
        %v789 = vpack.c.b16 %v780, %v779
        %v790 = vpack.c.b16 %v782, %v781
        %799 = vmatprep.subr.bf16.mxu0 0
        %800 = vmatpush1.bf16.msra.mxu0 %v783
        %801 = vmatprep.subr.bf16.mxu0 0
        %802 = vmatpush1.bf16.msra.mxu0 %v784
        %803 = vmatprep.subr.bf16.mxu0 0
        %804 = vmatpush1.bf16.msra.mxu0 %v785
        %805 = vmatprep.subr.bf16.mxu0 0
        %806 = vmatpush1.bf16.msra.mxu0 %v786
        %807 = vmatprep.subr.bf16.mxu0 0
        %808 = vmatpush1.bf16.msra.mxu0 %v787
        %809 = vmatprep.subr.bf16.mxu0 0
        %810 = vmatpush1.bf16.msra.mxu0 %v788
        %811 = vmatprep.subr.bf16.mxu0 0
        %812 = vmatpush1.bf16.msra.mxu0 %v789
        %813 = vmatprep.subr.bf16.mxu0 0
        %814 = vmatpush1.bf16.msra.mxu0 %v790
        %815 = vmatprep.subr.bf16.mxu0 0
        %816 = vmatpush1.bf16.msra.mxu0 0
        %817 = vmatprep.subr.bf16.mxu0 0
        %818 = vmatpush1.bf16.msra.mxu0 0
        %819 = vmatprep.subr.bf16.mxu0 0
        %820 = vmatpush1.bf16.msra.mxu0 0
        %821 = vmatprep.subr.bf16.mxu0 0
        %822 = vmatpush1.bf16.msra.mxu0 0
        %823 = vmatprep.subr.bf16.mxu0 0
        %824 = vmatpush1.bf16.msra.mxu0 0
        %825 = vmatprep.subr.bf16.mxu0 0
        %826 = vmatpush1.bf16.msra.mxu0 0
        %827 = vmatprep.subr.bf16.mxu0 0
        %828 = vmatpush1.bf16.msra.mxu0 0
        %829 = vmatprep.subr.bf16.mxu0 0
        %830 = vmatpush1.bf16.msra.mxu0 0
        %831 = vmatprep.mubr.bf16.mxu0 0
        %832 = vmatmul.mubr.bf16.gmra.mrb[0].mxu0 %v727
        %v833 = vpop.f32.mrb[0].mxu0
        %v834 = vadd.f32 %v749, %v833
        %v835 = vpop.f32.mrb[0].mxu0
        %v836 = vpop.f32.mrb[0].mxu0
        %v837 = vpop.f32.mrb[0].mxu0
        %838 = vdwg.mxu0
        %839 = vst [vmem:[%s337] sm:$0xff] %v834
        %s840 = sand.u32 %s186, 1
        %s841 = scalar_lea.sflag [#allocation4], %s840
        %s842 = sand.u32 %s186, 1
        %s843 = smul.addr %s842, 8
        %s844 = scalar_lea.vmem [#allocation10], %s843
        // Predicated region
        $region65: #{tpu_custom_call.1} parent=47 // pred_check
          %p845 = pneg %p196
        $region66: #{tpu_custom_call.1} parent=47 // pred_check_branch
          %847 = sbr.rel (%p845) target = $region68
        $region67: #{tpu_custom_call.1} parent=47 // pred_region
          %s849 = ssub.s32 128, 128
          %850 = vsyncadd %s841, %s849
          %s851 = smul.addr %s26, 128
          %s852 = scalar_lea.hbm %s7, %s851
          %s854 = sshll.u32 %s844, 4
          %s855 = int_to_ptr.vmem [resolvable:$true] %s854
          %857 = dma.vmem_to_hbm [thread:$0]  %s855, 128, %s852, %s841
        $region68: #{tpu_custom_call.1} parent=47 // pred_fallthru
          _
      $region48: #{tpu_custom_call.1} parent=5 // pred_fallthru
        _
      %p858 = scmp.le.s32.totalorder 2, %s21
      // Predicated region
      $region69: #{tpu_custom_call.1} parent=5 // pred_check
        %p859 = pneg %p858
      $region70: #{tpu_custom_call.1} parent=5 // pred_check_branch
        %861 = sbr.rel (%p859) target = $region72
      $region71: #{tpu_custom_call.1} parent=5 // pred_region
        %s862 = ssub.s32 %s21, 2
        // Predicated region
        $region73: #{tpu_custom_call.1} parent=71 // pred_check
          %p863 = pneg %p202
        $region74: #{tpu_custom_call.1} parent=71 // pred_check_branch
          %865 = sbr.rel (%p863) target = $region76
        $region75: #{tpu_custom_call.1} parent=71 // pred_region
          %s866 = sand.u32 %s187, 1
          %s867 = scalar_lea.sflag [#allocation4], %s866
          %s868 = sand.u32 %s187, 1
          %s869 = smul.addr %s868, 8
          %s870 = scalar_lea.vmem [#allocation10], %s869
          %871 = dma.done %s867, 128
        $region76: #{tpu_custom_call.1} parent=71 // pred_fallthru
          _
      $region72: #{tpu_custom_call.1} parent=5 // pred_fallthru
        _
    $region6: #{tpu_custom_call.1} parent=1 // loop_footer
      %s25 = sadd.s32 1, %s21
    $region7: #{tpu_custom_call.1} parent=1 // loop_footer_branch
      %20 = sbr.rel target = $region3
    $region8: #{tpu_custom_call.1} parent=1 // loop_exit
      _
    %872 = vsyncpa [#allocation3], 1
    %s873 = scalar_lea.sflag [#allocation3], 1
    %874 = vsyncpa %s873, 1
    %875 = vsyncpa [#allocation6], 1
    %876 = vsyncpa [#allocation9], 1
    %877 = vsyncpa [#allocation4], 1
    %s878 = scalar_lea.sflag [#allocation4], 1
    %879 = vsyncpa %s878, 1

</llo_original>
